<compile_context>
chip_gen: v7x
topology: tpu7x:2x2x1
jax: 0.10.0
libtpu: 0.0.40
codegen_flags: <defaults>
</compile_context>

<pallas_src>
import numpy as np
import jax
import jax.numpy as jnp
from jax.experimental import pallas as pl
from jax.experimental.pallas import tpu as pltpu


_PACK_DIM = 64   # packed input lanes: [enc(32) | sh(16) | sel(1) | pad(15)]
_ENC_DIM = 32
_SEL_LANE = 48


# -----------------------------------------------------------------------------
# Spherical harmonics (degree 4, 16 coeffs) -- same polynomials as tcnn's SH encoding.
# nerf._query_rgb maps dir -> (dir+1)/2 and tcnn maps back to [-1,1]; net effect is identity,
# so we evaluate the SH basis directly on the raw direction components.
# -----------------------------------------------------------------------------
def _sh16(x, y, z):
    x2, y2, z2 = x * x, y * y, z * z
    xy, yz, xz = x * y, y * z, x * z
    return [
        jnp.full_like(x, 0.28209479177387814),
        -0.48860251190291987 * y,
        0.48860251190291987 * z,
        -0.48860251190291987 * x,
        1.0925484305920792 * xy,
        -1.0925484305920792 * yz,
        0.94617469575755997 * z2 - 0.31539156525251999,
        -1.0925484305920792 * xz,
        0.54627421529603959 * (x2 - y2),
        0.59004358992664352 * y * (-3.0 * x2 + y2),
        2.8906114426405538 * xy * z,
        0.45704579946446572 * y * (1.0 - 5.0 * z2),
        0.3731763325901154 * z * (5.0 * z2 - 3.0),
        0.45704579946446572 * x * (1.0 - 5.0 * z2),
        1.4453057213202769 * z * (x2 - y2),
        0.59004358992664352 * x * (-x2 + 3.0 * y2),
    ]


def _round_up(x, m):
    return (x + m - 1) // m * m


# -----------------------------------------------------------------------------
# Fused Pallas kernel over a `tile`-row slab of samples.
#   x      [tile, 64]  bf16 : packed [enc | sh | sel | pad]
#   wstack [64, 128]   bf16 : [w1 (c2f-folded) | h1[:16] SH path], zero elsewhere
#   wgext  [64, 128]   bf16 : [w2[:,1:] @ h1[16:] | w2[:,0] | zero-pad]
#   h2     [64, 64]    bf16
#   h3e    [64, 8]     bf16 : h3 padded to 8 output lanes
#   out    [tile, 4]   f32  : [rgb(3) | density(1)]
# -----------------------------------------------------------------------------
def _ba_field_kernel(x_ref, wstack_ref, wgext_ref, h2_ref, h3_ref, out_ref):
    f32, bf16 = jnp.float32, jnp.bfloat16
    x = x_ref[...]                                              # [T, 64] bf16
    sel = x[:, _SEL_LANE:_SEL_LANE + 1].astype(f32)             # [T, 1] (exact 0/1 in bf16)

    # (1) mlp_base layer 1 and the SH path of mlp_head layer 1 in one 128-wide MXU push.
    m1 = jnp.dot(x, wstack_ref[...], preferred_element_type=f32)     # [T, 128]
    h = jnp.maximum(m1[:, 0:64].astype(bf16), 0)                     # [T, 64]  relu in bf16
    sh_path = m1[:, 64:128]                                          # [T, 64]  f32

    # (2) geo path (w2[:,1:] @ h1[16:]) and density column (w2[:,0]) in one 128-wide push.
    m2 = jnp.dot(h, wgext_ref[...], preferred_element_type=f32)      # [T, 128]
    den_logit = m2[:, 64:65]                                         # [T, 1]
    t = jnp.maximum((m2[:, 0:64] + sh_path).astype(bf16), 0)         # [T, 64]

    # (3) mlp_head layers 2..3 (h3 zero-padded to 8 output lanes).
    t = jnp.maximum(jnp.dot(t, h2_ref[...], preferred_element_type=f32).astype(bf16), 0)
    rgb8 = jnp.dot(t, h3_ref[...], preferred_element_type=f32)       # [T, 8]

    # (4) merged transcendental tail: one exp pass over [T,8].
    #     lanes 0..2 hold -rgb_logit (sigmoid), lane 3 holds den_logit - 1 (trunc_exp).
    lane = jax.lax.broadcasted_iota(jnp.int32, rgb8.shape, 1)
    e = jnp.exp(jnp.where(lane == 3, den_logit - 1.0, -rgb8))
    rgb = jnp.minimum(pl.reciprocal(1.0 + e[:, 0:3], approx=True), 1.0)
    den = e[:, 3:4] * sel           # trunc_exp(logit - 1) * inside-aabb selector

    # two direct lane-sliced stores (no XLU concat)
    out_ref[:, 0:3] = rgb
    out_ref[:, 3:4] = den


# -----------------------------------------------------------------------------
# Plain-JAX glue: multiresolution hash-grid encoding, vectorized over levels & corners
# (one flattened table, a single jnp.take).
# -----------------------------------------------------------------------------
def hash_grid_encode(x_norm, tables, resolutions):
    # x_norm: [N, 3];  tables: [L, T, F]
    L, T, F = tables.shape
    N = x_norm.shape[0]
    res = jnp.asarray(resolutions, jnp.float32)                      # [L]
    pos = x_norm[None, :, :] * res[:, None, None]                    # [L, N, 3]
    pos0 = jnp.floor(pos)
    frac = pos - pos0                                                # [L, N, 3]
    pos_i = pos0.astype(jnp.int32).astype(jnp.uint32)                # defined wrap for negatives

    corners = np.array([[(c >> d) & 1 for d in range(3)] for c in range(8)], dtype=np.uint32)
    corners_j = jnp.asarray(corners, jnp.uint32)                     # [8, 3]
    cpos = pos_i[None] + corners_j[:, None, None, :]                 # [8, L, N, 3]

    primes = jnp.asarray([1, 2654435761, 805459861], jnp.uint32)
    idx = (cpos[..., 0] * primes[0]) ^ (cpos[..., 1] * primes[1]) ^ (cpos[..., 2] * primes[2])
    idx = (idx % jnp.uint32(T)).astype(jnp.int32)                    # [8, L, N]
    flat_idx = idx + (jnp.arange(L, dtype=jnp.int32) * T)[None, :, None]

    flat_tables = tables.reshape(L * T, F)
    vals = jnp.take(flat_tables, flat_idx.reshape(-1), axis=0).reshape(8, L, N, F)

    w = jnp.where(corners_j[:, None, None, :] == 1, frac[None], 1.0 - frac[None])
    w = jnp.prod(w, axis=-1)[..., None]                              # [8, L, N, 1]
    feats = jnp.sum(w * vals, axis=0)                                # [L, N, F]
    return jnp.transpose(feats, (1, 0, 2)).reshape(N, L * F)         # [N, L*F]


def c2f_level_weights(c2f, progress, n_levels, n_features_per_level):
    # BAradianceField.get_weights (static python `progress`)
    start, end = c2f
    alpha = (progress - start) / (end - start) * (n_levels - 1)
    k = np.arange(n_levels - 1, dtype=np.float32)
    w = (1.0 - np.cos(np.clip(alpha - k, 0.0, 1.0) * np.pi)) / 2.0
    weights = np.concatenate([np.ones(n_features_per_level, np.float32),
                              np.repeat(w.astype(np.float32), n_features_per_level)])
    return jnp.asarray(weights, jnp.float32)[None, :]                # [1, L*F]


def init_params(key, n_levels=16, n_features_per_level=2, log2_hashmap_size=14,
                base_resolution=14, max_resolution=4096, hidden_dim=64, geo_feat_dim=15):
    keys = jax.random.split(key, 6)
    T = 2 ** log2_hashmap_size
    enc_dim = n_levels * n_features_per_level

    def w(k, shape):
        return jax.random.normal(k, shape, jnp.float32) * (1.0 / np.sqrt(shape[0]))

    growth = np.exp((np.log(max_resolution) - np.log(base_resolution)) / (n_levels - 1))
    resolutions = [int(np.floor(base_resolution * growth ** l)) for l in range(n_levels)]
    return dict(
        tables=jax.random.uniform(keys[0], (n_levels, T, n_features_per_level),
                                  jnp.float32, -1e-4, 1e-4),
        w1=w(keys[1], (enc_dim, hidden_dim)),                 # mlp_base layer 1 (32 -> 64)
        w2=w(keys[2], (hidden_dim, 1 + geo_feat_dim)),        # mlp_base layer 2 (64 -> 16)
        h1=w(keys[3], (16 + geo_feat_dim, hidden_dim)),       # mlp_head layer 1 (31 -> 64)
        h2=w(keys[4], (hidden_dim, hidden_dim)),              # mlp_head layer 2
        h3=w(keys[5], (hidden_dim, 3)),                       # mlp_head layer 3
        resolutions=resolutions,
        n_levels=n_levels,
        n_features_per_level=n_features_per_level,
    )


def compute_features(positions, directions, params, aabb):
    aabb = jnp.asarray(aabb, jnp.float32)
    aabb_min, aabb_max = aabb[:3], aabb[3:]
    x_norm = (positions - aabb_min) / (aabb_max - aabb_min)                      # [N, 3]
    enc = hash_grid_encode(x_norm, params["tables"], params["resolutions"])      # [N, 32]
    selector = jnp.prod(
        jnp.where((x_norm > 0.0) & (x_norm < 1.0), 1.0, 0.0),
        axis=-1, keepdims=True).astype(jnp.float32)                              # [N, 1]
    dx, dy, dz = directions[:, 0:1], directions[:, 1:2], directions[:, 2:3]
    sh = jnp.concatenate(_sh16(dx, dy, dz), axis=-1)                             # [N, 16]
    return enc, sh, selector


def _choose_tile(N, tn, align=16):
    tile = min(tn, _round_up(N, align))
    # v7x megacore: keep >= 2 grid steps so dimension_semantics=("parallel",) uses both TCs
    if tile > align and _round_up(N, tile) // tile < 2:
        tile = _round_up((tile + 1) // 2, align)
    return tile


def ba_radiance_field_forward(positions, directions, params, aabb, c2f, progress, tn=2048):
    """forward(positions, directions) with c2f enabled -> (rgb [N,3], density [N,1])."""
    N = positions.shape[0]
    enc, sh, selector = compute_features(positions, directions, params, aabb)
    enc_dim = enc.shape[1]
    assert enc_dim == _ENC_DIM, "packed-input layout assumes a 32-wide hash encoding"

    # --- one packed bf16 input slab: [enc | sh | sel | zero-pad] -> a single DMA stream ---------
    pad_cols = _PACK_DIM - (enc_dim + 16 + 1)
    packed = jnp.concatenate(
        [enc, sh, selector, jnp.zeros((N, pad_cols), jnp.float32)],
        axis=-1).astype(jnp.bfloat16)                                            # [N, 64]

    # --- weight pre-folding / stacking (one-time, mathematically identical) ---------------------
    cw = c2f_level_weights(c2f, progress, params["n_levels"],
                           params["n_features_per_level"])                       # [1, 32]
    w1s = cw[0][:, None] * params["w1"]                                          # [32, 64]
    hsh = params["h1"][:16, :]                                                   # [16, 64]
    wstack = jnp.zeros((_PACK_DIM, 128), jnp.float32)
    wstack = wstack.at[0:enc_dim, 0:64].set(w1s)
    wstack = wstack.at[enc_dim:enc_dim + 16, 64:128].set(hsh)
    wstack = wstack.astype(jnp.bfloat16)                                         # [64, 128]

    wg = params["w2"][:, 1:] @ params["h1"][16:, :]                              # [64, 64]
    wgext = jnp.zeros((64, 128), jnp.float32)
    wgext = wgext.at[:, 0:64].set(wg)
    wgext = wgext.at[:, 64].set(params["w2"][:, 0])                              # density column
    wgext = wgext.astype(jnp.bfloat16)                                           # [64, 128]

    h2 = params["h2"].astype(jnp.bfloat16)                                       # [64, 64]
    h3e = jnp.zeros((64, 8), jnp.float32).at[:, 0:3].set(params["h3"]).astype(jnp.bfloat16)

    # --- tiling: large sublane-aligned sample tiles, >=2 grid steps when possible ---------------
    tile = _choose_tile(N, tn)
    Np = _round_up(N, tile)
    if Np != N:
        packed = jnp.pad(packed, ((0, Np - N), (0, 0)))

    full = lambda shape: pl.BlockSpec(shape, lambda i: (0, 0))

    out = pl.pallas_call(
        _ba_field_kernel,
        out_shape=jax.ShapeDtypeStruct((Np, 4), jnp.float32),
        grid=(Np // tile,),
        in_specs=[
            pl.BlockSpec((tile, _PACK_DIM), lambda i: (i, 0)),    # packed samples (bf16)
            full((_PACK_DIM, 128)),                               # W_stack
            full((64, 128)),                                      # Wg_ext
            full((64, 64)),                                       # h2
            full((64, 8)),                                        # h3 (padded)
        ],
        out_specs=pl.BlockSpec((tile, 4), lambda i: (i, 0)),
        compiler_params=pltpu.CompilerParams(dimension_semantics=("parallel",)),
    )(packed, wstack, wgext, h2, h3e)

    rgb = out[:N, 0:3]
    density = out[:N, 3:4]
    return rgb, density


# -----------------------------------------------------------------------------
# Pure-JAX f32 reference of the fused MLP (for correctness checking only).
# -----------------------------------------------------------------------------
def _reference_mlp(enc, sh, selector, params, cw):
    h = jnp.maximum((enc * cw) @ params["w1"], 0.0)
    base = h @ params["w2"]
    density = jnp.exp(base[:, 0:1] - 1.0) * selector          # trunc_exp(x - 1) * selector
    geo = base[:, 1:]
    t = jnp.maximum(jnp.concatenate([sh, geo], axis=-1) @ params["h1"], 0.0)
    t = jnp.maximum(t @ params["h2"], 0.0)
    rgb = jax.nn.sigmoid(t @ params["h3"])
    return rgb, density


if __name__ == "__main__":
    key = jax.random.PRNGKey(0)
    kp, kx, kd = jax.random.split(key, 3)

    params = init_params(kp)

    N = 256
    aabb = jnp.asarray([-1.0, -1.0, -1.0, 1.0, 1.0, 1.0], jnp.float32)
    positions = jax.random.uniform(kx, (N, 3), jnp.float32, minval=-1.2, maxval=1.2)
    directions = jax.random.normal(kd, (N, 3), jnp.float32)
    directions = directions / jnp.linalg.norm(directions, axis=-1, keepdims=True)

    c2f, progress = (0.1, 0.5), 0.3
    rgb, density = ba_radiance_field_forward(positions, directions, params, aabb, c2f, progress)
    jax.block_until_ready((rgb, density))

    # reference check (same hash-grid features, unfused f32 MLP)
    enc, sh, selector = compute_features(positions, directions, params, aabb)
    cw = c2f_level_weights(c2f, progress, params["n_levels"], params["n_features_per_level"])
    rgb_ref, den_ref = _reference_mlp(enc, sh, selector, params, cw)

    assert rgb.shape == (N, 3) and density.shape == (N, 1)
    assert rgb.dtype == jnp.float32 and density.dtype == jnp.float32
    assert bool(jnp.all(jnp.isfinite(rgb))) and bool(jnp.all(jnp.isfinite(density)))
    assert bool(jnp.all(rgb >= 0.0)) and bool(jnp.all(rgb <= 1.0))
    assert bool(jnp.all(density >= 0.0))
    assert float(jnp.max(jnp.abs(rgb - rgb_ref))) < 0.05
    assert float(jnp.max(jnp.abs(density - den_ref))) < 0.05
    print("KERNEL_OK")
</pallas_src>

<mosaic_0001>
module attributes {stable_mosaic.version = 11 : i64} {
  func.func @_ba_field_kernel(%arg0: i32, %arg1: memref<128x64xbf16, #tpu.memory_space<vmem>>, %arg2: memref<64x128xbf16, #tpu.memory_space<vmem>>, %arg3: memref<64x128xbf16, #tpu.memory_space<vmem>>, %arg4: memref<64x64xbf16, #tpu.memory_space<vmem>>, %arg5: memref<64x8xbf16, #tpu.memory_space<vmem>>, %arg6: memref<128x4xf32, #tpu.memory_space<vmem>>) attributes {dimension_semantics = [#tpu.dimension_semantics<parallel>], iteration_bounds = array<i64: 2>, scalar_prefetch = 0 : i64, scratch_operands = 0 : i64, tpu.core_type = #tpu.core_type<tc>, window_params = [{transform_indices = @transform_0, window_bounds = array<i64: 128, 64>}, {pipeline_mode = #tpu.pipeline_mode<synchronous>, transform_indices = @transform_1, window_bounds = array<i64: 64, 128>}, {pipeline_mode = #tpu.pipeline_mode<synchronous>, transform_indices = @transform_2, window_bounds = array<i64: 64, 128>}, {pipeline_mode = #tpu.pipeline_mode<synchronous>, transform_indices = @transform_3, window_bounds = array<i64: 64, 64>}, {pipeline_mode = #tpu.pipeline_mode<synchronous>, transform_indices = @transform_4, window_bounds = array<i64: 64, 8>}, {transform_indices = @transform_5, window_bounds = array<i64: 128, 4>}]} {
    %c0 = arith.constant 0 : index
    %c0_0 = arith.constant 0 : index
    %0 = vector.load %arg1[%c0, %c0_0] : memref<128x64xbf16, #tpu.memory_space<vmem>>, vector<128x64xbf16>
    %1 = vector.extract_strided_slice %0 {offsets = [0, 48], sizes = [128, 1], strides = [1, 1]} : vector<128x64xbf16> to vector<128x1xbf16>
    %2 = arith.extf %1 : vector<128x1xbf16> to vector<128x1xf32>
    %c0_1 = arith.constant 0 : index
    %c0_2 = arith.constant 0 : index
    %3 = vector.load %arg2[%c0_1, %c0_2] : memref<64x128xbf16, #tpu.memory_space<vmem>>, vector<64x128xbf16>
    %cst = arith.constant dense<0.000000e+00> : vector<128x128xf32>
    %4 = tpu.matmul %0, %3, %cst {dimension_numbers = #tpu.dot_dimension_numbers<[1], [0], [0], [1], [0, 0, 1, 1], [], []>} : vector<128x64xbf16>, vector<64x128xbf16>, vector<128x128xf32> -> vector<128x128xf32>
    %5 = vector.extract_strided_slice %4 {offsets = [0, 0], sizes = [128, 64], strides = [1, 1]} : vector<128x128xf32> to vector<128x64xf32>
    %6 = arith.truncf %5 : vector<128x64xf32> to vector<128x64xbf16>
    %cst_3 = arith.constant 0.000000e+00 : bf16
    %7 = vector.broadcast %cst_3 : bf16 to vector<128x64xbf16>
    %8 = arith.maximumf %6, %7 : vector<128x64xbf16>
    %9 = vector.extract_strided_slice %4 {offsets = [0, 64], sizes = [128, 64], strides = [1, 1]} : vector<128x128xf32> to vector<128x64xf32>
    %c0_4 = arith.constant 0 : index
    %c0_5 = arith.constant 0 : index
    %10 = vector.load %arg3[%c0_4, %c0_5] : memref<64x128xbf16, #tpu.memory_space<vmem>>, vector<64x128xbf16>
    %cst_6 = arith.constant dense<0.000000e+00> : vector<128x128xf32>
    %11 = tpu.matmul %8, %10, %cst_6 {dimension_numbers = #tpu.dot_dimension_numbers<[1], [0], [0], [1], [0, 0, 1, 1], [], []>} : vector<128x64xbf16>, vector<64x128xbf16>, vector<128x128xf32> -> vector<128x128xf32>
    %12 = vector.extract_strided_slice %11 {offsets = [0, 64], sizes = [128, 1], strides = [1, 1]} : vector<128x128xf32> to vector<128x1xf32>
    %13 = vector.extract_strided_slice %11 {offsets = [0, 0], sizes = [128, 64], strides = [1, 1]} : vector<128x128xf32> to vector<128x64xf32>
    %14 = arith.addf %13, %9 : vector<128x64xf32>
    %15 = arith.truncf %14 : vector<128x64xf32> to vector<128x64xbf16>
    %cst_7 = arith.constant 0.000000e+00 : bf16
    %16 = vector.broadcast %cst_7 : bf16 to vector<128x64xbf16>
    %17 = arith.maximumf %15, %16 : vector<128x64xbf16>
    %c0_8 = arith.constant 0 : index
    %c0_9 = arith.constant 0 : index
    %18 = vector.load %arg4[%c0_8, %c0_9] : memref<64x64xbf16, #tpu.memory_space<vmem>>, vector<64x64xbf16>
    %cst_10 = arith.constant dense<0.000000e+00> : vector<128x64xf32>
    %19 = tpu.matmul %17, %18, %cst_10 {dimension_numbers = #tpu.dot_dimension_numbers<[1], [0], [0], [1], [0, 0, 1, 1], [], []>} : vector<128x64xbf16>, vector<64x64xbf16>, vector<128x64xf32> -> vector<128x64xf32>
    %20 = arith.truncf %19 : vector<128x64xf32> to vector<128x64xbf16>
    %cst_11 = arith.constant 0.000000e+00 : bf16
    %21 = vector.broadcast %cst_11 : bf16 to vector<128x64xbf16>
    %22 = arith.maximumf %20, %21 : vector<128x64xbf16>
    %c0_12 = arith.constant 0 : index
    %c0_13 = arith.constant 0 : index
    %23 = vector.load %arg5[%c0_12, %c0_13] : memref<64x8xbf16, #tpu.memory_space<vmem>>, vector<64x8xbf16>
    %cst_14 = arith.constant dense<0.000000e+00> : vector<128x8xf32>
    %24 = tpu.matmul %22, %23, %cst_14 {dimension_numbers = #tpu.dot_dimension_numbers<[1], [0], [0], [1], [0, 0, 1, 1], [], []>} : vector<128x64xbf16>, vector<64x8xbf16>, vector<128x8xf32> -> vector<128x8xf32>
    %25 = tpu.iota {dimensions = array<i32: 1>} : vector<128x8xi32>
    %c3_i32 = arith.constant 3 : i32
    %26 = vector.broadcast %c3_i32 : i32 to vector<128x8xi32>
    %27 = arith.cmpi eq, %25, %26 : vector<128x8xi32>
    %cst_15 = arith.constant 1.000000e+00 : f32
    %28 = vector.broadcast %cst_15 : f32 to vector<128x1xf32>
    %29 = arith.subf %12, %28 : vector<128x1xf32>
    %cst_16 = arith.constant 0.000000e+00 : f32
    %30 = vector.broadcast %cst_16 : f32 to vector<128x8xf32>
    %31 = arith.subf %30, %24 : vector<128x8xf32>
    %32 = vector.shape_cast %29 : vector<128x1xf32> to vector<128x1xf32>
    %33 = vector.broadcast %32 : vector<128x1xf32> to vector<128x8xf32>
    %34 = arith.select %27, %33, %31 : vector<128x8xi1>, vector<128x8xf32>
    %35 = math.exp %34 : vector<128x8xf32>
    %36 = vector.extract_strided_slice %35 {offsets = [0, 0], sizes = [128, 3], strides = [1, 1]} : vector<128x8xf32> to vector<128x3xf32>
    %cst_17 = arith.constant 1.000000e+00 : f32
    %37 = vector.broadcast %cst_17 : f32 to vector<128x3xf32>
    %38 = arith.addf %37, %36 : vector<128x3xf32>
    %39 = tpu.reciprocal %38 {approx = true} : vector<128x3xf32> -> vector<128x3xf32>
    %cst_18 = arith.constant 1.000000e+00 : f32
    %40 = vector.broadcast %cst_18 : f32 to vector<128x3xf32>
    %41 = arith.minimumf %39, %40 : vector<128x3xf32>
    %42 = vector.extract_strided_slice %35 {offsets = [0, 3], sizes = [128, 1], strides = [1, 1]} : vector<128x8xf32> to vector<128x1xf32>
    %43 = arith.mulf %42, %2 : vector<128x1xf32>
    %c0_19 = arith.constant 0 : index
    %c0_20 = arith.constant 0 : index
    %44 = vector.load %arg6[%c0_19, %c0_20] : memref<128x4xf32, #tpu.memory_space<vmem>>, vector<128x3xf32>
    tpu.vector_store %arg6[%c0_19, %c0_20], %41 {strides = array<i32>} : memref<128x4xf32, #tpu.memory_space<vmem>>, vector<128x3xf32>,
    %c0_21 = arith.constant 0 : index
    %c3 = arith.constant 3 : index
    %45 = vector.load %arg6[%c0_21, %c3] : memref<128x4xf32, #tpu.memory_space<vmem>>, vector<128x1xf32>
    tpu.vector_store %arg6[%c0_21, %c3], %43 {strides = array<i32>} : memref<128x4xf32, #tpu.memory_space<vmem>>, vector<128x1xf32>,
    return
  }
  func.func @transform_0(%arg0: i32) -> (i32, i32) {
    %c0_i32 = arith.constant 0 : i32
    %c0_i32_0 = arith.constant 0 : i32
    return %arg0, %c0_i32 : i32, i32
  }
  func.func @transform_1(%arg0: i32) -> (i32, i32) {
    %c0_i32 = arith.constant 0 : i32
    %c0_i32_0 = arith.constant 0 : i32
    %c0_i32_1 = arith.constant 0 : i32
    return %c0_i32, %c0_i32_0 : i32, i32
  }
  func.func @transform_2(%arg0: i32) -> (i32, i32) {
    %c0_i32 = arith.constant 0 : i32
    %c0_i32_0 = arith.constant 0 : i32
    %c0_i32_1 = arith.constant 0 : i32
    return %c0_i32, %c0_i32_0 : i32, i32
  }
  func.func @transform_3(%arg0: i32) -> (i32, i32) {
    %c0_i32 = arith.constant 0 : i32
    %c0_i32_0 = arith.constant 0 : i32
    %c0_i32_1 = arith.constant 0 : i32
    return %c0_i32, %c0_i32_0 : i32, i32
  }
  func.func @transform_4(%arg0: i32) -> (i32, i32) {
    %c0_i32 = arith.constant 0 : i32
    %c0_i32_0 = arith.constant 0 : i32
    %c0_i32_1 = arith.constant 0 : i32
    return %c0_i32, %c0_i32_0 : i32, i32
  }
  func.func @transform_5(%arg0: i32) -> (i32, i32) {
    %c0_i32 = arith.constant 0 : i32
    %c0_i32_0 = arith.constant 0 : i32
    return %arg0, %c0_i32 : i32, i32
  }
}

</mosaic_0001>

<llo_original>
// kernel: tpu_custom_call.1
$region0: #{tpu_custom_call.1}
  #allocation0 [shape = 'u32[]', space=smem, size = 0x4, offset = 0x4, fixed_abs, tag = 'smem constant byte address 0x4 - core index']
  #allocation1 [shape = 'u32[144,128]{1,0:T(1,128)}', space=vmem, size = 0x12000, scoped, tag = 'internal scratch']
  %s0 = inlined_call_operand.vmem [shape: bf16[256,64], index: 0, kind: input, shape index: {}]
  %s1 = inlined_call_operand.vmem [shape: bf16[64,128], index: 1, kind: input, shape index: {}]
  %s2 = inlined_call_operand.vmem [shape: bf16[64,128], index: 2, kind: input, shape index: {}]
  %s3 = inlined_call_operand.vmem [shape: bf16[64,64], index: 3, kind: input, shape index: {}]
  %s4 = inlined_call_operand.vmem [shape: bf16[64,8], index: 4, kind: input, shape index: {}]
  %s5 = inlined_call_operand.vmem [shape: f32[256,4], index: 5, kind: output, shape index: {}]
  %s6 = sld [smem:[#allocation0]]
  $region53: #{tpu_custom_call.1} parent=0
    _
  %s8 = ssub.s32 1, %s6
  %s9 = scalar_select 0, %s8, %s6
  loop: start=0, step=1, limit=4
  $region2: #{tpu_custom_call.1} parent=0 // loop_pre_header
    _
  $region3: #{tpu_custom_call.1} parent=0 // loop_header
    %s11 = sphi 0, %s15
    %p12 = scmp.ge.s32.totalorder %s11, 4
    %s21 = sphi 0, %s23
    %s24 = sphi 0, %s21
    %s25 = sphi 0, %s24
    %s41 = sphi 0, %s25
    %s45 = sphi 0, %s45
    %s47 = sphi 0, %s45
    %s48 = sphi 0, %s47
    %s62 = sphi 0, %s48
    %s66 = sphi 0, %s66
    %s68 = sphi 0, %s66
    %s69 = sphi 0, %s68
    %s83 = sphi 0, %s69
    %s87 = sphi 0, %s87
    %s89 = sphi 0, %s87
    %s90 = sphi 0, %s89
    %s104 = sphi 0, %s90
    %s108 = sphi 0, %s108
    %s110 = sphi 0, %s108
    %s111 = sphi 0, %s110
    %s125 = sphi 0, %s111
    %s131 = sphi 0, %s133
    %s134 = sphi 0, %s131
    %s135 = sphi 0, %s134
    %s151 = sphi 0, %s135
  $region4: #{tpu_custom_call.1} parent=0 // loop_header_branch
    %14 = sbr.rel (%p12) target = $region8
  $region5: #{tpu_custom_call.1} parent=0 // loop_body
    %s16 = ssub.s32 %s11, 1
    %s17 = ssub.s32 %s11, 2
    %s18 = sadd.s32 %s11, 1
    %s19 = ssub.s32 %s11, %s18
    %p20 = scmp.eq.s32.totalorder %s19, 0
    %s22 = sadd.s32 %s21, 1
    %s23 = scalar_select %p20, %s21, %s22
    %p26 = pneg %p20
    %p27 = scmp.eq.s32.totalorder %s11, 1
    %p28 = por %p26, %p27
    %p29 = scmp.ne.s32.totalorder %s21, %s24
    %p30 = scmp.eq.s32.totalorder %s11, 0
    %p31 = por %p29, %p30
    %p32 = scmp.ne.s32.totalorder %s21, %s24
    %p33 = scmp.eq.s32.totalorder %s16, 1
    %p34 = por %p32, %p33
    %p35 = scmp.ne.s32.totalorder %s24, %s25
    %p36 = scmp.eq.s32.totalorder %s16, 0
    %p37 = por %p35, %p36
    %p38 = scmp.ne.s32.totalorder %s24, %s25
    %p39 = scmp.eq.s32.totalorder %s17, 1
    %p40 = por %p38, %p39
    %p42 = scmp.ne.s32.totalorder %s25, %s41
    %p43 = scmp.eq.s32.totalorder %s17, 0
    %p44 = por %p42, %p43
    %s46 = sadd.s32 %s45, 1
    %p49 = scmp.eq.s32.totalorder %s11, 1
    %p50 = scmp.ne.s32.totalorder %s45, %s47
    %p51 = scmp.eq.s32.totalorder %s11, 0
    %p52 = por %p50, %p51
    %p53 = scmp.ne.s32.totalorder %s45, %s47
    %p54 = scmp.eq.s32.totalorder %s16, 1
    %p55 = por %p53, %p54
    %p56 = scmp.ne.s32.totalorder %s47, %s48
    %p57 = scmp.eq.s32.totalorder %s16, 0
    %p58 = por %p56, %p57
    %p59 = scmp.ne.s32.totalorder %s47, %s48
    %p60 = scmp.eq.s32.totalorder %s17, 1
    %p61 = por %p59, %p60
    %p63 = scmp.ne.s32.totalorder %s48, %s62
    %p64 = scmp.eq.s32.totalorder %s17, 0
    %p65 = por %p63, %p64
    %s67 = sadd.s32 %s66, 1
    %p70 = scmp.eq.s32.totalorder %s11, 1
    %p71 = scmp.ne.s32.totalorder %s66, %s68
    %p72 = scmp.eq.s32.totalorder %s11, 0
    %p73 = por %p71, %p72
    %p74 = scmp.ne.s32.totalorder %s66, %s68
    %p75 = scmp.eq.s32.totalorder %s16, 1
    %p76 = por %p74, %p75
    %p77 = scmp.ne.s32.totalorder %s68, %s69
    %p78 = scmp.eq.s32.totalorder %s16, 0
    %p79 = por %p77, %p78
    %p80 = scmp.ne.s32.totalorder %s68, %s69
    %p81 = scmp.eq.s32.totalorder %s17, 1
    %p82 = por %p80, %p81
    %p84 = scmp.ne.s32.totalorder %s69, %s83
    %p85 = scmp.eq.s32.totalorder %s17, 0
    %p86 = por %p84, %p85
    %s88 = sadd.s32 %s87, 1
    %p91 = scmp.eq.s32.totalorder %s11, 1
    %p92 = scmp.ne.s32.totalorder %s87, %s89
    %p93 = scmp.eq.s32.totalorder %s11, 0
    %p94 = por %p92, %p93
    %p95 = scmp.ne.s32.totalorder %s87, %s89
    %p96 = scmp.eq.s32.totalorder %s16, 1
    %p97 = por %p95, %p96
    %p98 = scmp.ne.s32.totalorder %s89, %s90
    %p99 = scmp.eq.s32.totalorder %s16, 0
    %p100 = por %p98, %p99
    %p101 = scmp.ne.s32.totalorder %s89, %s90
    %p102 = scmp.eq.s32.totalorder %s17, 1
    %p103 = por %p101, %p102
    %p105 = scmp.ne.s32.totalorder %s90, %s104
    %p106 = scmp.eq.s32.totalorder %s17, 0
    %p107 = por %p105, %p106
    %s109 = sadd.s32 %s108, 1
    %p112 = scmp.eq.s32.totalorder %s11, 1
    %p113 = scmp.ne.s32.totalorder %s108, %s110
    %p114 = scmp.eq.s32.totalorder %s11, 0
    %p115 = por %p113, %p114
    %p116 = scmp.ne.s32.totalorder %s108, %s110
    %p117 = scmp.eq.s32.totalorder %s16, 1
    %p118 = por %p116, %p117
    %p119 = scmp.ne.s32.totalorder %s110, %s111
    %p120 = scmp.eq.s32.totalorder %s16, 0
    %p121 = por %p119, %p120
    %p122 = scmp.ne.s32.totalorder %s110, %s111
    %p123 = scmp.eq.s32.totalorder %s17, 1
    %p124 = por %p122, %p123
    %p126 = scmp.ne.s32.totalorder %s111, %s125
    %p127 = scmp.eq.s32.totalorder %s17, 0
    %p128 = por %p126, %p127
    %s129 = ssub.s32 %s11, %s18
    %p130 = scmp.eq.s32.totalorder %s129, 0
    %s132 = sadd.s32 %s131, 1
    %s133 = scalar_select %p130, %s131, %s132
    %p136 = pneg %p130
    %p137 = scmp.eq.s32.totalorder %s11, 1
    %p138 = por %p136, %p137
    %p139 = scmp.ne.s32.totalorder %s131, %s134
    %p140 = scmp.eq.s32.totalorder %s11, 0
    %p141 = por %p139, %p140
    %p142 = scmp.ne.s32.totalorder %s131, %s134
    %p143 = scmp.eq.s32.totalorder %s16, 1
    %p144 = por %p142, %p143
    %p145 = scmp.ne.s32.totalorder %s134, %s135
    %p146 = scmp.eq.s32.totalorder %s16, 0
    %p147 = por %p145, %p146
    %p148 = scmp.ne.s32.totalorder %s134, %s135
    %p149 = scmp.eq.s32.totalorder %s17, 1
    %p150 = por %p148, %p149
    %p152 = scmp.ne.s32.totalorder %s135, %s151
    %p153 = scmp.eq.s32.totalorder %s17, 0
    %p154 = por %p152, %p153
    %p155 = scmp.le.s32.totalorder 1, %s11
    %p156 = scmp.lt.s32.totalorder %s11, 3
    %p157 = pnand %p155, %p156
    %p158 = pneg %p157
    // Predicated region
    $region9: #{tpu_custom_call.1} parent=5 // pred_check
      _
    $region10: #{tpu_custom_call.1} parent=5 // pred_check_branch
      %160 = sbr.rel (%p157) target = $region12
    $region11: #{tpu_custom_call.1} parent=5 // pred_region
      %s161 = ssub.s32 %s11, 1
      // Predicated region
      $region13: #{tpu_custom_call.1} parent=11 // pred_check
        %p162 = pneg %p58
      $region14: #{tpu_custom_call.1} parent=11 // pred_check_branch
        %164 = sbr.rel (%p162) target = $region16
      $region15: #{tpu_custom_call.1} parent=11 // pred_region
        _
      $region16: #{tpu_custom_call.1} parent=11 // pred_fallthru
        _
      // Predicated region
      $region17: #{tpu_custom_call.1} parent=11 // pred_check
        %p165 = pneg %p79
      $region18: #{tpu_custom_call.1} parent=11 // pred_check_branch
        %167 = sbr.rel (%p165) target = $region20
      $region19: #{tpu_custom_call.1} parent=11 // pred_region
        _
      $region20: #{tpu_custom_call.1} parent=11 // pred_fallthru
        _
      // Predicated region
      $region21: #{tpu_custom_call.1} parent=11 // pred_check
        %p168 = pneg %p100
      $region22: #{tpu_custom_call.1} parent=11 // pred_check_branch
        %170 = sbr.rel (%p168) target = $region24
      $region23: #{tpu_custom_call.1} parent=11 // pred_region
        _
      $region24: #{tpu_custom_call.1} parent=11 // pred_fallthru
        _
      // Predicated region
      $region25: #{tpu_custom_call.1} parent=11 // pred_check
        %p171 = pneg %p121
      $region26: #{tpu_custom_call.1} parent=11 // pred_check_branch
        %173 = sbr.rel (%p171) target = $region28
      $region27: #{tpu_custom_call.1} parent=11 // pred_region
        _
      $region28: #{tpu_custom_call.1} parent=11 // pred_fallthru
        _
    $region12: #{tpu_custom_call.1} parent=5 // pred_fallthru
      _
    %p174 = scmp.lt.s32.totalorder %s11, 2
    // Predicated region
    $region29: #{tpu_custom_call.1} parent=5 // pred_check
      %p175 = pneg %p174
    $region30: #{tpu_custom_call.1} parent=5 // pred_check_branch
      %177 = sbr.rel (%p175) target = $region32
    $region31: #{tpu_custom_call.1} parent=5 // pred_region
      // Predicated region
      $region33: #{tpu_custom_call.1} parent=31 // pred_check
        %p178 = pneg %p31
      $region34: #{tpu_custom_call.1} parent=31 // pred_check_branch
        %180 = sbr.rel (%p178) target = $region36
      $region35: #{tpu_custom_call.1} parent=31 // pred_region
        %s181 = smul.u32 16, %s11
        %p182 = scmp.lt.s32.totalorder %s181, 31
        %s183 = scalar_select %p182, %s181, 31
        %s184 = smul.addr %s183, 4
        %s185 = scalar_lea.vmem %s0, %s184
        %s186 = smul.u32 16, %s11
      $region36: #{tpu_custom_call.1} parent=31 // pred_fallthru
        _
    $region32: #{tpu_custom_call.1} parent=5 // pred_fallthru
      _
    %p187 = scmp.le.s32.totalorder 1, %s11
    %p188 = scmp.lt.s32.totalorder %s11, 3
    %p189 = pnand %p187, %p188
    %p190 = pneg %p189
    // Predicated region
    $region37: #{tpu_custom_call.1} parent=5 // pred_check
      _
    $region38: #{tpu_custom_call.1} parent=5 // pred_check_branch
      %192 = sbr.rel (%p189) target = $region40
    $region39: #{tpu_custom_call.1} parent=5 // pred_region
      %s193 = ssub.s32 %s11, 1
      %s194 = smul.u32 16, %s16
      %p195 = scmp.lt.s32.totalorder %s194, 31
      %s196 = scalar_select %p195, %s194, 31
      %s197 = smul.addr %s196, 4
      %s198 = scalar_lea.vmem %s0, %s197
      %p199 = pneg %p37
      %p200 = pneg %p34
      %p201 = pneg %p58
      %p202 = pneg %p55
      %p203 = pneg %p79
      %p204 = pneg %p76
      %p205 = pneg %p100
      %p206 = pneg %p97
      %p207 = pneg %p121
      %p208 = pneg %p118
      %p209 = pneg %p147
      %p210 = pneg %p144
      %s211 = smul.u32 16, %s16
      %p212 = scmp.lt.s32.totalorder %s211, 31
      %s213 = scalar_select %p212, %s211, 31
      %s214 = smul.addr %s213, 8
      %s215 = scalar_lea.vmem %s5, %s214
      %s216 = smul.u32 16, %s16
      %p217 = scmp.lt.s32.totalorder %s216, 31
      %s218 = scalar_select %p217, %s216, 31
      %s219 = smul.addr %s218, 4
      %s220 = scalar_lea.vmem %s0, %s219
      %s221 = smul.u32 16, %s16
      %s222 = smul.u32 16, %s16
      %p223 = scmp.lt.s32.totalorder %s222, 31
      %s224 = scalar_select %p223, %s222, 31
      %s225 = smul.addr %s224, 8
      %s226 = scalar_lea.vmem %s5, %s225
      %s227 = smul.u32 16, %s16
      %v229 = vld [vmem:[%s220] sm:$0xf]
      %v230 = vld [vmem:[%s220 + $0x4] sm:$0xf]
      %v231 = vld [vmem:[%s220 + $0x8] sm:$0xf]
      %v232 = vld [vmem:[%s220 + $0xc] sm:$0xf]
      %v233 = vld [vmem:[%s220 + $0x10] sm:$0xf]
      %v234 = vld [vmem:[%s220 + $0x14] sm:$0xf]
      %v235 = vld [vmem:[%s220 + $0x18] sm:$0xf]
      %v236 = vld [vmem:[%s220 + $0x1c] sm:$0xf]
      %v237 = vld [vmem:[%s220 + $0x20] sm:$0xf]
      %v238 = vld [vmem:[%s220 + $0x24] sm:$0xf]
      %v239 = vld [vmem:[%s220 + $0x28] sm:$0xf]
      %v240 = vld [vmem:[%s220 + $0x2c] sm:$0xf]
      %v241 = vld [vmem:[%s220 + $0x30] sm:$0xf]
      %v242 = vld [vmem:[%s220 + $0x34] sm:$0xf]
      %v243 = vld [vmem:[%s220 + $0x38] sm:$0xf]
      %v244 = vld [vmem:[%s220 + $0x3c] sm:$0xf]
      %v245 = vunpack.c.l.bf16 %v229
      %v246 = vunpack.c.l.bf16 %v230
      %v247 = vunpack.c.l.bf16 %v231
      %v248 = vunpack.c.l.bf16 %v232
      %v249 = vunpack.c.l.bf16 %v233
      %v250 = vunpack.c.l.bf16 %v234
      %v251 = vunpack.c.l.bf16 %v235
      %v252 = vunpack.c.l.bf16 %v236
      %v253 = vunpack.c.l.bf16 %v237
      %v254 = vunpack.c.l.bf16 %v238
      %v255 = vunpack.c.l.bf16 %v239
      %v256 = vunpack.c.l.bf16 %v240
      %v257 = vunpack.c.l.bf16 %v241
      %v258 = vunpack.c.l.bf16 %v242
      %v259 = vunpack.c.l.bf16 %v243
      %v260 = vunpack.c.l.bf16 %v244
      %v261 = vld [vmem:[%s1] sm:$0xf]
      %v262 = vld [vmem:[%s1 + $0x4] sm:$0xf]
      %v263 = vld [vmem:[%s1 + $0x8] sm:$0xf]
      %v264 = vld [vmem:[%s1 + $0xc] sm:$0xf]
      %v265 = vld [vmem:[%s1 + $0x10] sm:$0xf]
      %v266 = vld [vmem:[%s1 + $0x14] sm:$0xf]
      %v267 = vld [vmem:[%s1 + $0x18] sm:$0xf]
      %v268 = vld [vmem:[%s1 + $0x1c] sm:$0xf]
      %v285 = vunpack.c.l.b16 %v229
      %v286 = vunpack.c.l.b16 %v230
      %v287 = vunpack.c.l.b16 %v231
      %v288 = vunpack.c.l.b16 %v232
      %v289 = vunpack.c.l.b16 %v233
      %v290 = vunpack.c.l.b16 %v234
      %v291 = vunpack.c.l.b16 %v235
      %v292 = vunpack.c.l.b16 %v236
      %v293 = vunpack.c.l.b16 %v237
      %v294 = vunpack.c.l.b16 %v238
      %v295 = vunpack.c.l.b16 %v239
      %v296 = vunpack.c.l.b16 %v240
      %v297 = vunpack.c.l.b16 %v241
      %v298 = vunpack.c.l.b16 %v242
      %v299 = vunpack.c.l.b16 %v243
      %v300 = vunpack.c.l.b16 %v244
      %v301 = vpack.c.b16 %v286, %v285
      %v302 = vpack.c.b16 %v288, %v287
      %v303 = vpack.c.b16 %v290, %v289
      %v304 = vpack.c.b16 %v292, %v291
      %v305 = vpack.c.b16 %v294, %v293
      %v306 = vpack.c.b16 %v296, %v295
      %v307 = vpack.c.b16 %v298, %v297
      %v308 = vpack.c.b16 %v300, %v299
      %v317 = vunpack.c.l.b16 %v261
      %v318 = vunpack.c.l.b16 %v262
      %v319 = vunpack.c.l.b16 %v263
      %v320 = vunpack.c.l.b16 %v264
      %v321 = vunpack.c.l.b16 %v265
      %v322 = vunpack.c.l.b16 %v266
      %v323 = vunpack.c.l.b16 %v267
      %v324 = vunpack.c.l.b16 %v268
      %v325 = vpack.c.b16 %v318, %v317
      %v326 = vpack.c.b16 %v320, %v319
      %v327 = vpack.c.b16 %v322, %v321
      %v328 = vpack.c.b16 %v324, %v323
      %vm333 = vcmask 523264
      %v335 = vsel %vm333, %v301, 0
      %v338 = vsel %vm333, %v302, 0
      %v341 = vsel %vm333, %v303, 0
      %v344 = vsel %vm333, %v304, 0
      %v347 = vsel %vm333, %v305, 0
      %v350 = vsel %vm333, %v306, 0
      %v353 = vsel %vm333, %v307, 0
      %v356 = vsel %vm333, %v308, 0
      %358 = vmatprep.subr.bf16.mxu0 0
      %359 = vmatpush1.bf16.msra.mxu0 %v325
      %360 = vmatprep.subr.bf16.mxu0 0
      %361 = vmatpush1.bf16.msra.mxu0 %v326
      %362 = vmatprep.subr.bf16.mxu0 0
      %363 = vmatpush1.bf16.msra.mxu0 %v327
      %364 = vmatprep.subr.bf16.mxu0 0
      %365 = vmatpush1.bf16.msra.mxu0 %v328
      %366 = vmatprep.subr.bf16.mxu0 0
      %367 = vmatpush1.bf16.msra.mxu0 0
      %368 = vmatprep.subr.bf16.mxu0 0
      %369 = vmatpush1.bf16.msra.mxu0 0
      %370 = vmatprep.subr.bf16.mxu0 0
      %371 = vmatpush1.bf16.msra.mxu0 0
      %372 = vmatprep.subr.bf16.mxu0 0
      %373 = vmatpush1.bf16.msra.mxu0 0
      %374 = vmatprep.subr.bf16.mxu0 0
      %375 = vmatpush1.bf16.msra.mxu0 0
      %376 = vmatprep.subr.bf16.mxu0 0
      %377 = vmatpush1.bf16.msra.mxu0 0
      %378 = vmatprep.subr.bf16.mxu0 0
      %379 = vmatpush1.bf16.msra.mxu0 0
      %380 = vmatprep.subr.bf16.mxu0 0
      %381 = vmatpush1.bf16.msra.mxu0 0
      %382 = vmatprep.subr.bf16.mxu0 0
      %383 = vmatpush1.bf16.msra.mxu0 0
      %384 = vmatprep.subr.bf16.mxu0 0
      %385 = vmatpush1.bf16.msra.mxu0 0
      %386 = vmatprep.subr.bf16.mxu0 0
      %387 = vmatpush1.bf16.msra.mxu0 0
      %388 = vmatprep.subr.bf16.mxu0 0
      %389 = vmatpush1.bf16.msra.mxu0 0
      %390 = vmatprep.mubr.bf16.mxu0 0
      %391 = vmatmul.mubr.bf16.gmra.mrb[0].mxu0 %v335
      %v392 = vpop.f32.mrb[0].mxu0
      %v393 = vadd.f32 0.0, %v392
      %v394 = vpop.f32.mrb[0].mxu0
      %v395 = vpop.f32.mrb[0].mxu0
      %v396 = vadd.f32 0.0, %v395
      %v397 = vpop.f32.mrb[0].mxu0
      %398 = vmatprep.mubr.bf16.mxu0 0
      %399 = vmatmul.mubr.bf16.gmra.mrb[0].mxu0 %v338
      %v400 = vpop.f32.mrb[0].mxu0
      %v401 = vadd.f32 0.0, %v400
      %v402 = vpop.f32.mrb[0].mxu0
      %v403 = vpop.f32.mrb[0].mxu0
      %v404 = vadd.f32 0.0, %v403
      %v405 = vpop.f32.mrb[0].mxu0
      %406 = vmatprep.mubr.bf16.mxu0 0
      %407 = vmatmul.mubr.bf16.gmra.mrb[0].mxu0 %v341
      %v408 = vpop.f32.mrb[0].mxu0
      %v409 = vadd.f32 0.0, %v408
      %v410 = vpop.f32.mrb[0].mxu0
      %v411 = vpop.f32.mrb[0].mxu0
      %v412 = vadd.f32 0.0, %v411
      %v413 = vpop.f32.mrb[0].mxu0
      %414 = vmatprep.mubr.bf16.mxu0 0
      %415 = vmatmul.mubr.bf16.gmra.mrb[0].mxu0 %v344
      %v416 = vpop.f32.mrb[0].mxu0
      %v417 = vadd.f32 0.0, %v416
      %v418 = vpop.f32.mrb[0].mxu0
      %v419 = vpop.f32.mrb[0].mxu0
      %v420 = vadd.f32 0.0, %v419
      %v421 = vpop.f32.mrb[0].mxu0
      %422 = vmatprep.mubr.bf16.mxu0 0
      %423 = vmatmul.mubr.bf16.gmra.mrb[0].mxu0 %v347
      %v424 = vpop.f32.mrb[0].mxu0
      %v425 = vadd.f32 0.0, %v424
      %v426 = vpop.f32.mrb[0].mxu0
      %v427 = vpop.f32.mrb[0].mxu0
      %v428 = vadd.f32 0.0, %v427
      %v429 = vpop.f32.mrb[0].mxu0
      %430 = vmatprep.mubr.bf16.mxu0 0
      %431 = vmatmul.mubr.bf16.gmra.mrb[0].mxu0 %v350
      %v432 = vpop.f32.mrb[0].mxu0
      %v433 = vadd.f32 0.0, %v432
      %v434 = vpop.f32.mrb[0].mxu0
      %v435 = vpop.f32.mrb[0].mxu0
      %v436 = vadd.f32 0.0, %v435
      %v437 = vpop.f32.mrb[0].mxu0
      %438 = vmatprep.mubr.bf16.mxu0 0
      %439 = vmatmul.mubr.bf16.gmra.mrb[0].mxu0 %v353
      %v440 = vpop.f32.mrb[0].mxu0
      %v441 = vadd.f32 0.0, %v440
      %v442 = vpop.f32.mrb[0].mxu0
      %v443 = vpop.f32.mrb[0].mxu0
      %v444 = vadd.f32 0.0, %v443
      %v445 = vpop.f32.mrb[0].mxu0
      %446 = vmatprep.mubr.bf16.mxu0 0
      %447 = vmatmul.mubr.bf16.gmra.mrb[0].mxu0 %v356
      %v448 = vpop.f32.mrb[0].mxu0
      %v449 = vadd.f32 0.0, %v448
      %v450 = vpop.f32.mrb[0].mxu0
      %v451 = vpop.f32.mrb[0].mxu0
      %v452 = vadd.f32 0.0, %v451
      %v453 = vpop.f32.mrb[0].mxu0
      %454 = vdwg.mxu0
      %v455 = vpack.c.bf16 %v396, %v393
      %v456 = vpack.c.bf16 %v404, %v401
      %v457 = vpack.c.bf16 %v412, %v409
      %v458 = vpack.c.bf16 %v420, %v417
      %v459 = vpack.c.bf16 %v428, %v425
      %v460 = vpack.c.bf16 %v436, %v433
      %v461 = vpack.c.bf16 %v444, %v441
      %v462 = vpack.c.bf16 %v452, %v449
      %v463 = vmax.bf16 %v455, 0
      %v464 = vmax.bf16 %v456, 0
      %v465 = vmax.bf16 %v457, 0
      %v466 = vmax.bf16 %v458, 0
      %v467 = vmax.bf16 %v459, 0
      %v468 = vmax.bf16 %v460, 0
      %v469 = vmax.bf16 %v461, 0
      %v470 = vmax.bf16 %v462, 0
      %v471 = vld [vmem:[%s2] sm:$0xf]
      %v472 = vld [vmem:[%s2 + $0x4] sm:$0xf]
      %v473 = vld [vmem:[%s2 + $0x8] sm:$0xf]
      %v474 = vld [vmem:[%s2 + $0xc] sm:$0xf]
      %v475 = vld [vmem:[%s2 + $0x10] sm:$0xf]
      %v476 = vld [vmem:[%s2 + $0x14] sm:$0xf]
      %v477 = vld [vmem:[%s2 + $0x18] sm:$0xf]
      %v478 = vld [vmem:[%s2 + $0x1c] sm:$0xf]
      %v487 = vunpack.c.l.b16 %v471
      %v488 = vunpack.c.l.b16 %v472
      %v489 = vunpack.c.l.b16 %v473
      %v490 = vunpack.c.l.b16 %v474
      %v491 = vunpack.c.l.b16 %v475
      %v492 = vunpack.c.l.b16 %v476
      %v493 = vunpack.c.l.b16 %v477
      %v494 = vunpack.c.l.b16 %v478
      %v495 = vpack.c.b16 %v488, %v487
      %v496 = vpack.c.b16 %v490, %v489
      %v497 = vpack.c.b16 %v492, %v491
      %v498 = vpack.c.b16 %v494, %v493
      %v504 = vsel %vm333, %v463, 0
      %v507 = vsel %vm333, %v464, 0
      %v510 = vsel %vm333, %v465, 0
      %v513 = vsel %vm333, %v466, 0
      %v516 = vsel %vm333, %v467, 0
      %v519 = vsel %vm333, %v468, 0
      %v522 = vsel %vm333, %v469, 0
      %v525 = vsel %vm333, %v470, 0
      %527 = vmatprep.subr.bf16.mxu0 0
      %528 = vmatpush1.bf16.msra.mxu0 %v495
      %529 = vmatprep.subr.bf16.mxu0 0
      %530 = vmatpush1.bf16.msra.mxu0 %v496
      %531 = vmatprep.subr.bf16.mxu0 0
      %532 = vmatpush1.bf16.msra.mxu0 %v497
      %533 = vmatprep.subr.bf16.mxu0 0
      %534 = vmatpush1.bf16.msra.mxu0 %v498
      %535 = vmatprep.subr.bf16.mxu0 0
      %536 = vmatpush1.bf16.msra.mxu0 0
      %537 = vmatprep.subr.bf16.mxu0 0
      %538 = vmatpush1.bf16.msra.mxu0 0
      %539 = vmatprep.subr.bf16.mxu0 0
      %540 = vmatpush1.bf16.msra.mxu0 0
      %541 = vmatprep.subr.bf16.mxu0 0
      %542 = vmatpush1.bf16.msra.mxu0 0
      %543 = vmatprep.subr.bf16.mxu0 0
      %544 = vmatpush1.bf16.msra.mxu0 0
      %545 = vmatprep.subr.bf16.mxu0 0
      %546 = vmatpush1.bf16.msra.mxu0 0
      %547 = vmatprep.subr.bf16.mxu0 0
      %548 = vmatpush1.bf16.msra.mxu0 0
      %549 = vmatprep.subr.bf16.mxu0 0
      %550 = vmatpush1.bf16.msra.mxu0 0
      %551 = vmatprep.subr.bf16.mxu0 0
      %552 = vmatpush1.bf16.msra.mxu0 0
      %553 = vmatprep.subr.bf16.mxu0 0
      %554 = vmatpush1.bf16.msra.mxu0 0
      %555 = vmatprep.subr.bf16.mxu0 0
      %556 = vmatpush1.bf16.msra.mxu0 0
      %557 = vmatprep.subr.bf16.mxu0 0
      %558 = vmatpush1.bf16.msra.mxu0 0
      %559 = vmatprep.mubr.bf16.mxu0 0
      %560 = vmatmul.mubr.bf16.gmra.mrb[0].mxu0 %v504
      %v561 = vpop.f32.mrb[0].mxu0
      %v562 = vadd.f32 0.0, %v561
      %v563 = vpop.f32.mrb[0].mxu0
      %v564 = vpop.f32.mrb[0].mxu0
      %v565 = vadd.f32 0.0, %v564
      %v566 = vpop.f32.mrb[0].mxu0
      %567 = vmatprep.mubr.bf16.mxu0 0
      %568 = vmatmul.mubr.bf16.gmra.mrb[0].mxu0 %v507
      %v569 = vpop.f32.mrb[0].mxu0
      %v570 = vadd.f32 0.0, %v569
      %v571 = vpop.f32.mrb[0].mxu0
      %v572 = vpop.f32.mrb[0].mxu0
      %v573 = vadd.f32 0.0, %v572
      %v574 = vpop.f32.mrb[0].mxu0
      %575 = vmatprep.mubr.bf16.mxu0 0
      %576 = vmatmul.mubr.bf16.gmra.mrb[0].mxu0 %v510
      %v577 = vpop.f32.mrb[0].mxu0
      %v578 = vadd.f32 0.0, %v577
      %v579 = vpop.f32.mrb[0].mxu0
      %v580 = vpop.f32.mrb[0].mxu0
      %v581 = vadd.f32 0.0, %v580
      %v582 = vpop.f32.mrb[0].mxu0
      %583 = vmatprep.mubr.bf16.mxu0 0
      %584 = vmatmul.mubr.bf16.gmra.mrb[0].mxu0 %v513
      %v585 = vpop.f32.mrb[0].mxu0
      %v586 = vadd.f32 0.0, %v585
      %v587 = vpop.f32.mrb[0].mxu0
      %v588 = vpop.f32.mrb[0].mxu0
      %v589 = vadd.f32 0.0, %v588
      %v590 = vpop.f32.mrb[0].mxu0
      %591 = vmatprep.mubr.bf16.mxu0 0
      %592 = vmatmul.mubr.bf16.gmra.mrb[0].mxu0 %v516
      %v593 = vpop.f32.mrb[0].mxu0
      %v594 = vadd.f32 0.0, %v593
      %v595 = vpop.f32.mrb[0].mxu0
      %v596 = vpop.f32.mrb[0].mxu0
      %v597 = vadd.f32 0.0, %v596
      %v598 = vpop.f32.mrb[0].mxu0
      %599 = vmatprep.mubr.bf16.mxu0 0
      %600 = vmatmul.mubr.bf16.gmra.mrb[0].mxu0 %v519
      %v601 = vpop.f32.mrb[0].mxu0
      %v602 = vadd.f32 0.0, %v601
      %v603 = vpop.f32.mrb[0].mxu0
      %v604 = vpop.f32.mrb[0].mxu0
      %v605 = vadd.f32 0.0, %v604
      %v606 = vpop.f32.mrb[0].mxu0
      %607 = vmatprep.mubr.bf16.mxu0 0
      %608 = vmatmul.mubr.bf16.gmra.mrb[0].mxu0 %v522
      %v609 = vpop.f32.mrb[0].mxu0
      %v610 = vadd.f32 0.0, %v609
      %v611 = vpop.f32.mrb[0].mxu0
      %v612 = vpop.f32.mrb[0].mxu0
      %v613 = vadd.f32 0.0, %v612
      %v614 = vpop.f32.mrb[0].mxu0
      %615 = vmatprep.mubr.bf16.mxu0 0
      %616 = vmatmul.mubr.bf16.gmra.mrb[0].mxu0 %v525
      %v617 = vpop.f32.mrb[0].mxu0
      %v618 = vadd.f32 0.0, %v617
      %v619 = vpop.f32.mrb[0].mxu0
      %v620 = vpop.f32.mrb[0].mxu0
      %v621 = vadd.f32 0.0, %v620
      %v622 = vpop.f32.mrb[0].mxu0
      %623 = vdwg.mxu0
      %640 = vrot.lane.b32.xlu0 %v393, 64
      %v641 = vpop.permute.xlu0 %640
      %642 = vrot.lane.b32.xlu0 %v396, 64
      %v643 = vpop.permute.xlu0 %642
      %644 = vrot.lane.b32.xlu0 %v401, 64
      %v645 = vpop.permute.xlu0 %644
      %646 = vrot.lane.b32.xlu0 %v404, 64
      %v647 = vpop.permute.xlu0 %646
      %648 = vrot.lane.b32.xlu0 %v409, 64
      %v649 = vpop.permute.xlu0 %648
      %650 = vrot.lane.b32.xlu0 %v412, 64
      %v651 = vpop.permute.xlu0 %650
      %652 = vrot.lane.b32.xlu0 %v417, 64
      %v653 = vpop.permute.xlu0 %652
      %654 = vrot.lane.b32.xlu0 %v420, 64
      %v655 = vpop.permute.xlu0 %654
      %656 = vrot.lane.b32.xlu0 %v425, 64
      %v657 = vpop.permute.xlu0 %656
      %658 = vrot.lane.b32.xlu0 %v428, 64
      %v659 = vpop.permute.xlu0 %658
      %660 = vrot.lane.b32.xlu0 %v433, 64
      %v661 = vpop.permute.xlu0 %660
      %662 = vrot.lane.b32.xlu0 %v436, 64
      %v663 = vpop.permute.xlu0 %662
      %664 = vrot.lane.b32.xlu0 %v441, 64
      %v665 = vpop.permute.xlu0 %664
      %666 = vrot.lane.b32.xlu0 %v444, 64
      %v667 = vpop.permute.xlu0 %666
      %668 = vrot.lane.b32.xlu0 %v449, 64
      %v669 = vpop.permute.xlu0 %668
      %670 = vrot.lane.b32.xlu0 %v452, 64
      %v671 = vpop.permute.xlu0 %670
      %v688 = vadd.f32 %v562, %v641
      %v689 = vadd.f32 %v565, %v643
      %v690 = vadd.f32 %v570, %v645
      %v691 = vadd.f32 %v573, %v647
      %v692 = vadd.f32 %v578, %v649
      %v693 = vadd.f32 %v581, %v651
      %v694 = vadd.f32 %v586, %v653
      %v695 = vadd.f32 %v589, %v655
      %v696 = vadd.f32 %v594, %v657
      %v697 = vadd.f32 %v597, %v659
      %v698 = vadd.f32 %v602, %v661
      %v699 = vadd.f32 %v605, %v663
      %v700 = vadd.f32 %v610, %v665
      %v701 = vadd.f32 %v613, %v667
      %v702 = vadd.f32 %v618, %v669
      %v703 = vadd.f32 %v621, %v671
      %v704 = vpack.c.bf16 %v689, %v688
      %v705 = vpack.c.bf16 %v691, %v690
      %v706 = vpack.c.bf16 %v693, %v692
      %v707 = vpack.c.bf16 %v695, %v694
      %v708 = vpack.c.bf16 %v697, %v696
      %v709 = vpack.c.bf16 %v699, %v698
      %v710 = vpack.c.bf16 %v701, %v700
      %v711 = vpack.c.bf16 %v703, %v702
      %v712 = vmax.bf16 %v704, 0
      %v713 = vmax.bf16 %v705, 0
      %v714 = vmax.bf16 %v706, 0
      %v715 = vmax.bf16 %v707, 0
      %v716 = vmax.bf16 %v708, 0
      %v717 = vmax.bf16 %v709, 0
      %v718 = vmax.bf16 %v710, 0
      %v719 = vmax.bf16 %v711, 0
      %v720 = vld [vmem:[%s3] sm:$0xf]
      %v721 = vld [vmem:[%s3 + $0x4] sm:$0xf]
      %v722 = vld [vmem:[%s3 + $0x8] sm:$0xf]
      %v723 = vld [vmem:[%s3 + $0xc] sm:$0xf]
      %v724 = vld [vmem:[%s3 + $0x10] sm:$0xf]
      %v725 = vld [vmem:[%s3 + $0x14] sm:$0xf]
      %v726 = vld [vmem:[%s3 + $0x18] sm:$0xf]
      %v727 = vld [vmem:[%s3 + $0x1c] sm:$0xf]
      %v736 = vunpack.c.l.b16 %v720
      %v737 = vunpack.c.l.b16 %v721
      %v738 = vunpack.c.l.b16 %v722
      %v739 = vunpack.c.l.b16 %v723
      %v740 = vunpack.c.l.b16 %v724
      %v741 = vunpack.c.l.b16 %v725
      %v742 = vunpack.c.l.b16 %v726
      %v743 = vunpack.c.l.b16 %v727
      %v744 = vpack.c.b16 %v737, %v736
      %v745 = vpack.c.b16 %v739, %v738
      %v746 = vpack.c.b16 %v741, %v740
      %v747 = vpack.c.b16 %v743, %v742
      %v753 = vsel %vm333, %v712, 0
      %v756 = vsel %vm333, %v713, 0
      %v759 = vsel %vm333, %v714, 0
      %v762 = vsel %vm333, %v715, 0
      %v765 = vsel %vm333, %v716, 0
      %v768 = vsel %vm333, %v717, 0
      %v771 = vsel %vm333, %v718, 0
      %v774 = vsel %vm333, %v719, 0
      %776 = vmatprep.subr.bf16.mxu0 0
      %777 = vmatpush1.bf16.msra.mxu0 %v744
      %778 = vmatprep.subr.bf16.mxu0 0
      %779 = vmatpush1.bf16.msra.mxu0 %v745
      %780 = vmatprep.subr.bf16.mxu0 0
      %781 = vmatpush1.bf16.msra.mxu0 %v746
      %782 = vmatprep.subr.bf16.mxu0 0
      %783 = vmatpush1.bf16.msra.mxu0 %v747
      %784 = vmatprep.subr.bf16.mxu0 0
      %785 = vmatpush1.bf16.msra.mxu0 0
      %786 = vmatprep.subr.bf16.mxu0 0
      %787 = vmatpush1.bf16.msra.mxu0 0
      %788 = vmatprep.subr.bf16.mxu0 0
      %789 = vmatpush1.bf16.msra.mxu0 0
      %790 = vmatprep.subr.bf16.mxu0 0
      %791 = vmatpush1.bf16.msra.mxu0 0
      %792 = vmatprep.subr.bf16.mxu0 0
      %793 = vmatpush1.bf16.msra.mxu0 0
      %794 = vmatprep.subr.bf16.mxu0 0
      %795 = vmatpush1.bf16.msra.mxu0 0
      %796 = vmatprep.subr.bf16.mxu0 0
      %797 = vmatpush1.bf16.msra.mxu0 0
      %798 = vmatprep.subr.bf16.mxu0 0
      %799 = vmatpush1.bf16.msra.mxu0 0
      %800 = vmatprep.subr.bf16.mxu0 0
      %801 = vmatpush1.bf16.msra.mxu0 0
      %802 = vmatprep.subr.bf16.mxu0 0
      %803 = vmatpush1.bf16.msra.mxu0 0
      %804 = vmatprep.subr.bf16.mxu0 0
      %805 = vmatpush1.bf16.msra.mxu0 0
      %806 = vmatprep.subr.bf16.mxu0 0
      %807 = vmatpush1.bf16.msra.mxu0 0
      %808 = vmatprep.mubr.bf16.mxu0 0
      %809 = vmatmul.mubr.bf16.gmra.mrb[0].mxu0 %v753
      %v810 = vpop.f32.mrb[0].mxu0
      %v811 = vadd.f32 0.0, %v810
      %v812 = vpop.f32.mrb[0].mxu0
      %v813 = vpop.f32.mrb[0].mxu0
      %v814 = vadd.f32 0.0, %v813
      %v815 = vpop.f32.mrb[0].mxu0
      %816 = vmatprep.mubr.bf16.mxu0 0
      %817 = vmatmul.mubr.bf16.gmra.mrb[0].mxu0 %v756
      %v818 = vpop.f32.mrb[0].mxu0
      %v819 = vadd.f32 0.0, %v818
      %v820 = vpop.f32.mrb[0].mxu0
      %v821 = vpop.f32.mrb[0].mxu0
      %v822 = vadd.f32 0.0, %v821
      %v823 = vpop.f32.mrb[0].mxu0
      %824 = vmatprep.mubr.bf16.mxu0 0
      %825 = vmatmul.mubr.bf16.gmra.mrb[0].mxu0 %v759
      %v826 = vpop.f32.mrb[0].mxu0
      %v827 = vadd.f32 0.0, %v826
      %v828 = vpop.f32.mrb[0].mxu0
      %v829 = vpop.f32.mrb[0].mxu0
      %v830 = vadd.f32 0.0, %v829
      %v831 = vpop.f32.mrb[0].mxu0
      %832 = vmatprep.mubr.bf16.mxu0 0
      %833 = vmatmul.mubr.bf16.gmra.mrb[0].mxu0 %v762
      %v834 = vpop.f32.mrb[0].mxu0
      %v835 = vadd.f32 0.0, %v834
      %v836 = vpop.f32.mrb[0].mxu0
      %v837 = vpop.f32.mrb[0].mxu0
      %v838 = vadd.f32 0.0, %v837
      %v839 = vpop.f32.mrb[0].mxu0
      %840 = vmatprep.mubr.bf16.mxu0 0
      %841 = vmatmul.mubr.bf16.gmra.mrb[0].mxu0 %v765
      %v842 = vpop.f32.mrb[0].mxu0
      %v843 = vadd.f32 0.0, %v842
      %v844 = vpop.f32.mrb[0].mxu0
      %v845 = vpop.f32.mrb[0].mxu0
      %v846 = vadd.f32 0.0, %v845
      %v847 = vpop.f32.mrb[0].mxu0
      %848 = vmatprep.mubr.bf16.mxu0 0
      %849 = vmatmul.mubr.bf16.gmra.mrb[0].mxu0 %v768
      %v850 = vpop.f32.mrb[0].mxu0
      %v851 = vadd.f32 0.0, %v850
      %v852 = vpop.f32.mrb[0].mxu0
      %v853 = vpop.f32.mrb[0].mxu0
      %v854 = vadd.f32 0.0, %v853
      %v855 = vpop.f32.mrb[0].mxu0
      %856 = vmatprep.mubr.bf16.mxu0 0
      %857 = vmatmul.mubr.bf16.gmra.mrb[0].mxu0 %v771
      %v858 = vpop.f32.mrb[0].mxu0
      %v859 = vadd.f32 0.0, %v858
      %v860 = vpop.f32.mrb[0].mxu0
      %v861 = vpop.f32.mrb[0].mxu0
      %v862 = vadd.f32 0.0, %v861
      %v863 = vpop.f32.mrb[0].mxu0
      %864 = vmatprep.mubr.bf16.mxu0 0
      %865 = vmatmul.mubr.bf16.gmra.mrb[0].mxu0 %v774
      %v866 = vpop.f32.mrb[0].mxu0
      %v867 = vadd.f32 0.0, %v866
      %v868 = vpop.f32.mrb[0].mxu0
      %v869 = vpop.f32.mrb[0].mxu0
      %v870 = vadd.f32 0.0, %v869
      %v871 = vpop.f32.mrb[0].mxu0
      %872 = vdwg.mxu0
      %v873 = vpack.c.bf16 %v814, %v811
      %v874 = vpack.c.bf16 %v822, %v819
      %v875 = vpack.c.bf16 %v830, %v827
      %v876 = vpack.c.bf16 %v838, %v835
      %v877 = vpack.c.bf16 %v846, %v843
      %v878 = vpack.c.bf16 %v854, %v851
      %v879 = vpack.c.bf16 %v862, %v859
      %v880 = vpack.c.bf16 %v870, %v867
      %v881 = vmax.bf16 %v873, 0
      %v882 = vmax.bf16 %v874, 0
      %v883 = vmax.bf16 %v875, 0
      %v884 = vmax.bf16 %v876, 0
      %v885 = vmax.bf16 %v877, 0
      %v886 = vmax.bf16 %v878, 0
      %v887 = vmax.bf16 %v879, 0
      %v888 = vmax.bf16 %v880, 0
      %v889 = vld [vmem:[%s4] sm:$0xf]
      %v890 = vld [vmem:[%s4 + $0x4] sm:$0xf]
      %v891 = vld [vmem:[%s4 + $0x8] sm:$0xf]
      %v892 = vld [vmem:[%s4 + $0xc] sm:$0xf]
      %v893 = vld [vmem:[%s4 + $0x10] sm:$0xf]
      %v894 = vld [vmem:[%s4 + $0x14] sm:$0xf]
      %v895 = vld [vmem:[%s4 + $0x18] sm:$0xf]
      %v896 = vld [vmem:[%s4 + $0x1c] sm:$0xf]
      %v905 = vunpack.c.l.b16 %v889
      %v906 = vunpack.c.l.b16 %v890
      %v907 = vunpack.c.l.b16 %v891
      %v908 = vunpack.c.l.b16 %v892
      %v909 = vunpack.c.l.b16 %v893
      %v910 = vunpack.c.l.b16 %v894
      %v911 = vunpack.c.l.b16 %v895
      %v912 = vunpack.c.l.b16 %v896
      %v913 = vpack.c.b16 %v906, %v905
      %v914 = vpack.c.b16 %v908, %v907
      %v915 = vpack.c.b16 %v910, %v909
      %v916 = vpack.c.b16 %v912, %v911
      %v922 = vsel %vm333, %v881, 0
      %v925 = vsel %vm333, %v882, 0
      %v928 = vsel %vm333, %v883, 0
      %v931 = vsel %vm333, %v884, 0
      %v934 = vsel %vm333, %v885, 0
      %v937 = vsel %vm333, %v886, 0
      %v940 = vsel %vm333, %v887, 0
      %v943 = vsel %vm333, %v888, 0
      %945 = vmatprep.subr.bf16.mxu0 0
      %946 = vmatpush1.bf16.msra.mxu0 %v913
      %947 = vmatprep.subr.bf16.mxu0 0
      %948 = vmatpush1.bf16.msra.mxu0 %v914
      %949 = vmatprep.subr.bf16.mxu0 0
      %950 = vmatpush1.bf16.msra.mxu0 %v915
      %951 = vmatprep.subr.bf16.mxu0 0
      %952 = vmatpush1.bf16.msra.mxu0 %v916
      %953 = vmatprep.subr.bf16.mxu0 0
      %954 = vmatpush1.bf16.msra.mxu0 0
      %955 = vmatprep.subr.bf16.mxu0 0
      %956 = vmatpush1.bf16.msra.mxu0 0
      %957 = vmatprep.subr.bf16.mxu0 0
      %958 = vmatpush1.bf16.msra.mxu0 0
      %959 = vmatprep.subr.bf16.mxu0 0
      %960 = vmatpush1.bf16.msra.mxu0 0
      %961 = vmatprep.subr.bf16.mxu0 0
      %962 = vmatpush1.bf16.msra.mxu0 0
      %963 = vmatprep.subr.bf16.mxu0 0
      %964 = vmatpush1.bf16.msra.mxu0 0
      %965 = vmatprep.subr.bf16.mxu0 0
      %966 = vmatpush1.bf16.msra.mxu0 0
      %967 = vmatprep.subr.bf16.mxu0 0
      %968 = vmatpush1.bf16.msra.mxu0 0
      %969 = vmatprep.subr.bf16.mxu0 0
      %970 = vmatpush1.bf16.msra.mxu0 0
      %971 = vmatprep.subr.bf16.mxu0 0
      %972 = vmatpush1.bf16.msra.mxu0 0
      %973 = vmatprep.subr.bf16.mxu0 0
      %974 = vmatpush1.bf16.msra.mxu0 0
      %975 = vmatprep.subr.bf16.mxu0 0
      %976 = vmatpush1.bf16.msra.mxu0 0
      %977 = vmatprep.mubr.bf16.mxu0 0
      %978 = vmatmul.mubr.bf16.gmra.mrb[0].mxu0 %v922
      %v979 = vpop.f32.mrb[0].mxu0
      %v980 = vadd.f32 0.0, %v979
      %v981 = vpop.f32.mrb[0].mxu0
      %v982 = vpop.f32.mrb[0].mxu0
      %v983 = vadd.f32 0.0, %v982
      %v984 = vpop.f32.mrb[0].mxu0
      %985 = vmatprep.mubr.bf16.mxu0 0
      %986 = vmatmul.mubr.bf16.gmra.mrb[0].mxu0 %v925
      %v987 = vpop.f32.mrb[0].mxu0
      %v988 = vadd.f32 0.0, %v987
      %v989 = vpop.f32.mrb[0].mxu0
      %v990 = vpop.f32.mrb[0].mxu0
      %v991 = vadd.f32 0.0, %v990
      %v992 = vpop.f32.mrb[0].mxu0
      %993 = vmatprep.mubr.bf16.mxu0 0
      %994 = vmatmul.mubr.bf16.gmra.mrb[0].mxu0 %v928
      %v995 = vpop.f32.mrb[0].mxu0
      %v996 = vadd.f32 0.0, %v995
      %v997 = vpop.f32.mrb[0].mxu0
      %v998 = vpop.f32.mrb[0].mxu0
      %v999 = vadd.f32 0.0, %v998
      %v1000 = vpop.f32.mrb[0].mxu0
      %1001 = vmatprep.mubr.bf16.mxu0 0
      %1002 = vmatmul.mubr.bf16.gmra.mrb[0].mxu0 %v931
      %v1003 = vpop.f32.mrb[0].mxu0
      %v1004 = vadd.f32 0.0, %v1003
      %v1005 = vpop.f32.mrb[0].mxu0
      %v1006 = vpop.f32.mrb[0].mxu0
      %v1007 = vadd.f32 0.0, %v1006
      %v1008 = vpop.f32.mrb[0].mxu0
      %1009 = vmatprep.mubr.bf16.mxu0 0
      %1010 = vmatmul.mubr.bf16.gmra.mrb[0].mxu0 %v934
      %v1011 = vpop.f32.mrb[0].mxu0
      %v1012 = vadd.f32 0.0, %v1011
      %v1013 = vpop.f32.mrb[0].mxu0
      %v1014 = vpop.f32.mrb[0].mxu0
      %v1015 = vadd.f32 0.0, %v1014
      %v1016 = vpop.f32.mrb[0].mxu0
      %1017 = vmatprep.mubr.bf16.mxu0 0
      %1018 = vmatmul.mubr.bf16.gmra.mrb[0].mxu0 %v937
      %v1019 = vpop.f32.mrb[0].mxu0
      %v1020 = vadd.f32 0.0, %v1019
      %v1021 = vpop.f32.mrb[0].mxu0
      %v1022 = vpop.f32.mrb[0].mxu0
      %v1023 = vadd.f32 0.0, %v1022
      %v1024 = vpop.f32.mrb[0].mxu0
      %1025 = vmatprep.mubr.bf16.mxu0 0
      %1026 = vmatmul.mubr.bf16.gmra.mrb[0].mxu0 %v940
      %v1027 = vpop.f32.mrb[0].mxu0
      %v1028 = vadd.f32 0.0, %v1027
      %v1029 = vpop.f32.mrb[0].mxu0
      %v1030 = vpop.f32.mrb[0].mxu0
      %v1031 = vadd.f32 0.0, %v1030
      %v1032 = vpop.f32.mrb[0].mxu0
      %1033 = vmatprep.mubr.bf16.mxu0 0
      %1034 = vmatmul.mubr.bf16.gmra.mrb[0].mxu0 %v943
      %v1035 = vpop.f32.mrb[0].mxu0
      %v1036 = vadd.f32 0.0, %v1035
      %v1037 = vpop.f32.mrb[0].mxu0
      %v1038 = vpop.f32.mrb[0].mxu0
      %v1039 = vadd.f32 0.0, %v1038
      %v1040 = vpop.f32.mrb[0].mxu0
      %1041 = vdwg.mxu0
      %v1042 = vlaneseq
      %v1043 = vand.u32 %v1042, 127
      %vm1044 = vcmp.eq.s32.totalorder %v1043, 3
      %v1045 = vsub.f32 %v562, 1.0
      %v1046 = vsub.f32 %v565, 1.0
      %v1047 = vsub.f32 %v570, 1.0
      %v1048 = vsub.f32 %v573, 1.0
      %v1049 = vsub.f32 %v578, 1.0
      %v1050 = vsub.f32 %v581, 1.0
      %v1051 = vsub.f32 %v586, 1.0
      %v1052 = vsub.f32 %v589, 1.0
      %v1053 = vsub.f32 %v594, 1.0
      %v1054 = vsub.f32 %v597, 1.0
      %v1055 = vsub.f32 %v602, 1.0
      %v1056 = vsub.f32 %v605, 1.0
      %v1057 = vsub.f32 %v610, 1.0
      %v1058 = vsub.f32 %v613, 1.0
      %v1059 = vsub.f32 %v618, 1.0
      %v1060 = vsub.f32 %v621, 1.0
      %v1061 = vsub.f32 0.0, %v980
      %v1062 = vsub.f32 0.0, %v983
      %v1063 = vsub.f32 0.0, %v988
      %v1064 = vsub.f32 0.0, %v991
      %v1065 = vsub.f32 0.0, %v996
      %v1066 = vsub.f32 0.0, %v999
      %v1067 = vsub.f32 0.0, %v1004
      %v1068 = vsub.f32 0.0, %v1007
      %v1069 = vsub.f32 0.0, %v1012
      %v1070 = vsub.f32 0.0, %v1015
      %v1071 = vsub.f32 0.0, %v1020
      %v1072 = vsub.f32 0.0, %v1023
      %v1073 = vsub.f32 0.0, %v1028
      %v1074 = vsub.f32 0.0, %v1031
      %v1075 = vsub.f32 0.0, %v1036
      %v1076 = vsub.f32 0.0, %v1039
      %1078 = vset.pattern.permute.xlu0 64
      %1079 = vperm.xlu0 %1078, %v1045
      %v1080 = vpop.permute.xlu0 %1079
      %1083 = vset.pattern.permute.xlu0 64
      %1084 = vperm.xlu0 %1083, %v1046
      %v1085 = vpop.permute.xlu0 %1084
      %1088 = vset.pattern.permute.xlu0 64
      %1089 = vperm.xlu0 %1088, %v1047
      %v1090 = vpop.permute.xlu0 %1089
      %1093 = vset.pattern.permute.xlu0 64
      %1094 = vperm.xlu0 %1093, %v1048
      %v1095 = vpop.permute.xlu0 %1094
      %1098 = vset.pattern.permute.xlu0 64
      %1099 = vperm.xlu0 %1098, %v1049
      %v1100 = vpop.permute.xlu0 %1099
      %1103 = vset.pattern.permute.xlu0 64
      %1104 = vperm.xlu0 %1103, %v1050
      %v1105 = vpop.permute.xlu0 %1104
      %1108 = vset.pattern.permute.xlu0 64
      %1109 = vperm.xlu0 %1108, %v1051
      %v1110 = vpop.permute.xlu0 %1109
      %1113 = vset.pattern.permute.xlu0 64
      %1114 = vperm.xlu0 %1113, %v1052
      %v1115 = vpop.permute.xlu0 %1114
      %1118 = vset.pattern.permute.xlu0 64
      %1119 = vperm.xlu0 %1118, %v1053
      %v1120 = vpop.permute.xlu0 %1119
      %1123 = vset.pattern.permute.xlu0 64
      %1124 = vperm.xlu0 %1123, %v1054
      %v1125 = vpop.permute.xlu0 %1124
      %1128 = vset.pattern.permute.xlu0 64
      %1129 = vperm.xlu0 %1128, %v1055
      %v1130 = vpop.permute.xlu0 %1129
      %1133 = vset.pattern.permute.xlu0 64
      %1134 = vperm.xlu0 %1133, %v1056
      %v1135 = vpop.permute.xlu0 %1134
      %1138 = vset.pattern.permute.xlu0 64
      %1139 = vperm.xlu0 %1138, %v1057
      %v1140 = vpop.permute.xlu0 %1139
      %1143 = vset.pattern.permute.xlu0 64
      %1144 = vperm.xlu0 %1143, %v1058
      %v1145 = vpop.permute.xlu0 %1144
      %1148 = vset.pattern.permute.xlu0 64
      %1149 = vperm.xlu0 %1148, %v1059
      %v1150 = vpop.permute.xlu0 %1149
      %1153 = vset.pattern.permute.xlu0 64
      %1154 = vperm.xlu0 %1153, %v1060
      %v1155 = vpop.permute.xlu0 %1154
      %v1157 = vsel %vm1044, %v1080, %v1061
      %v1158 = vsel %vm1044, %v1085, %v1062
      %v1159 = vsel %vm1044, %v1090, %v1063
      %v1160 = vsel %vm1044, %v1095, %v1064
      %v1161 = vsel %vm1044, %v1100, %v1065
      %v1162 = vsel %vm1044, %v1105, %v1066
      %v1163 = vsel %vm1044, %v1110, %v1067
      %v1164 = vsel %vm1044, %v1115, %v1068
      %v1165 = vsel %vm1044, %v1120, %v1069
      %v1166 = vsel %vm1044, %v1125, %v1070
      %v1167 = vsel %vm1044, %v1130, %v1071
      %v1168 = vsel %vm1044, %v1135, %v1072
      %v1169 = vsel %vm1044, %v1140, %v1073
      %v1170 = vsel %vm1044, %v1145, %v1074
      %v1171 = vsel %vm1044, %v1150, %v1075
      %v1172 = vsel %vm1044, %v1155, %v1076
      %v1173 = vmul.f32 %v1157, 1.442695
      %v1174 = vpow.pop %v1173
      %v1175 = vmul.f32 %v1158, 1.442695
      %v1176 = vpow.pop %v1175
      %v1177 = vmul.f32 %v1159, 1.442695
      %v1178 = vpow.pop %v1177
      %v1179 = vmul.f32 %v1160, 1.442695
      %v1180 = vpow.pop %v1179
      %v1181 = vmul.f32 %v1161, 1.442695
      %v1182 = vpow.pop %v1181
      %v1183 = vmul.f32 %v1162, 1.442695
      %v1184 = vpow.pop %v1183
      %v1185 = vmul.f32 %v1163, 1.442695
      %v1186 = vpow.pop %v1185
      %v1187 = vmul.f32 %v1164, 1.442695
      %v1188 = vpow.pop %v1187
      %v1189 = vmul.f32 %v1165, 1.442695
      %v1190 = vpow.pop %v1189
      %v1191 = vmul.f32 %v1166, 1.442695
      %v1192 = vpow.pop %v1191
      %v1193 = vmul.f32 %v1167, 1.442695
      %v1194 = vpow.pop %v1193
      %v1195 = vmul.f32 %v1168, 1.442695
      %v1196 = vpow.pop %v1195
      %v1197 = vmul.f32 %v1169, 1.442695
      %v1198 = vpow.pop %v1197
      %v1199 = vmul.f32 %v1170, 1.442695
      %v1200 = vpow.pop %v1199
      %v1201 = vmul.f32 %v1171, 1.442695
      %v1202 = vpow.pop %v1201
      %v1203 = vmul.f32 %v1172, 1.442695
      %v1204 = vpow.pop %v1203
      %v1205 = vadd.f32 %v1174, 1.0
      %v1206 = vadd.f32 %v1176, 1.0
      %v1207 = vadd.f32 %v1178, 1.0
      %v1208 = vadd.f32 %v1180, 1.0
      %v1209 = vadd.f32 %v1182, 1.0
      %v1210 = vadd.f32 %v1184, 1.0
      %v1211 = vadd.f32 %v1186, 1.0
      %v1212 = vadd.f32 %v1188, 1.0
      %v1213 = vadd.f32 %v1190, 1.0
      %v1214 = vadd.f32 %v1192, 1.0
      %v1215 = vadd.f32 %v1194, 1.0
      %v1216 = vadd.f32 %v1196, 1.0
      %v1217 = vadd.f32 %v1198, 1.0
      %v1218 = vadd.f32 %v1200, 1.0
      %v1219 = vadd.f32 %v1202, 1.0
      %v1220 = vadd.f32 %v1204, 1.0
      %v1221 = vrcp.pop %v1205
      %v1222 = vrcp.pop %v1206
      %v1223 = vrcp.pop %v1207
      %v1224 = vrcp.pop %v1208
      %v1225 = vrcp.pop %v1209
      %v1226 = vrcp.pop %v1210
      %v1227 = vrcp.pop %v1211
      %v1228 = vrcp.pop %v1212
      %v1229 = vrcp.pop %v1213
      %v1230 = vrcp.pop %v1214
      %v1231 = vrcp.pop %v1215
      %v1232 = vrcp.pop %v1216
      %v1233 = vrcp.pop %v1217
      %v1234 = vrcp.pop %v1218
      %v1235 = vrcp.pop %v1219
      %v1236 = vrcp.pop %v1220
      %v1237 = vmin.f32 %v1221, 1.0
      %v1238 = vmin.f32 %v1222, 1.0
      %v1239 = vmin.f32 %v1223, 1.0
      %v1240 = vmin.f32 %v1224, 1.0
      %v1241 = vmin.f32 %v1225, 1.0
      %v1242 = vmin.f32 %v1226, 1.0
      %v1243 = vmin.f32 %v1227, 1.0
      %v1244 = vmin.f32 %v1228, 1.0
      %v1245 = vmin.f32 %v1229, 1.0
      %v1246 = vmin.f32 %v1230, 1.0
      %v1247 = vmin.f32 %v1231, 1.0
      %v1248 = vmin.f32 %v1232, 1.0
      %v1249 = vmin.f32 %v1233, 1.0
      %v1250 = vmin.f32 %v1234, 1.0
      %v1251 = vmin.f32 %v1235, 1.0
      %v1252 = vmin.f32 %v1236, 1.0
      %1269 = vrot.lane.b32.xlu0 %v245, 83
      %v1270 = vpop.permute.xlu0 %1269
      %1271 = vrot.lane.b32.xlu0 %v246, 83
      %v1272 = vpop.permute.xlu0 %1271
      %1273 = vrot.lane.b32.xlu0 %v247, 83
      %v1274 = vpop.permute.xlu0 %1273
      %1275 = vrot.lane.b32.xlu0 %v248, 83
      %v1276 = vpop.permute.xlu0 %1275
      %1277 = vrot.lane.b32.xlu0 %v249, 83
      %v1278 = vpop.permute.xlu0 %1277
      %1279 = vrot.lane.b32.xlu0 %v250, 83
      %v1280 = vpop.permute.xlu0 %1279
      %1281 = vrot.lane.b32.xlu0 %v251, 83
      %v1282 = vpop.permute.xlu0 %1281
      %1283 = vrot.lane.b32.xlu0 %v252, 83
      %v1284 = vpop.permute.xlu0 %1283
      %1285 = vrot.lane.b32.xlu0 %v253, 83
      %v1286 = vpop.permute.xlu0 %1285
      %1287 = vrot.lane.b32.xlu0 %v254, 83
      %v1288 = vpop.permute.xlu0 %1287
      %1289 = vrot.lane.b32.xlu0 %v255, 83
      %v1290 = vpop.permute.xlu0 %1289
      %1291 = vrot.lane.b32.xlu0 %v256, 83
      %v1292 = vpop.permute.xlu0 %1291
      %1293 = vrot.lane.b32.xlu0 %v257, 83
      %v1294 = vpop.permute.xlu0 %1293
      %1295 = vrot.lane.b32.xlu0 %v258, 83
      %v1296 = vpop.permute.xlu0 %1295
      %1297 = vrot.lane.b32.xlu0 %v259, 83
      %v1298 = vpop.permute.xlu0 %1297
      %1299 = vrot.lane.b32.xlu0 %v260, 83
      %v1300 = vpop.permute.xlu0 %1299
      %v1317 = vmul.f32 %v1174, %v1270
      %v1318 = vmul.f32 %v1176, %v1272
      %v1319 = vmul.f32 %v1178, %v1274
      %v1320 = vmul.f32 %v1180, %v1276
      %v1321 = vmul.f32 %v1182, %v1278
      %v1322 = vmul.f32 %v1184, %v1280
      %v1323 = vmul.f32 %v1186, %v1282
      %v1324 = vmul.f32 %v1188, %v1284
      %v1325 = vmul.f32 %v1190, %v1286
      %v1326 = vmul.f32 %v1192, %v1288
      %v1327 = vmul.f32 %v1194, %v1290
      %v1328 = vmul.f32 %v1196, %v1292
      %v1329 = vmul.f32 %v1198, %v1294
      %v1330 = vmul.f32 %v1200, %v1296
      %v1331 = vmul.f32 %v1202, %v1298
      %v1332 = vmul.f32 %v1204, %v1300
      %vm1333 = vcmask 23552
      %1334 = vst.msk [vmem:[%s226] sm:$0xff] %vm1333, %v1237
      %1335 = vst.msk [vmem:[%s226 + $0x8] sm:$0xff] %vm1333, %v1238
      %1336 = vst.msk [vmem:[%s226 + $0x10] sm:$0xff] %vm1333, %v1239
      %1337 = vst.msk [vmem:[%s226 + $0x18] sm:$0xff] %vm1333, %v1240
      %1338 = vst.msk [vmem:[%s226 + $0x20] sm:$0xff] %vm1333, %v1241
      %1339 = vst.msk [vmem:[%s226 + $0x28] sm:$0xff] %vm1333, %v1242
      %1340 = vst.msk [vmem:[%s226 + $0x30] sm:$0xff] %vm1333, %v1243
      %1341 = vst.msk [vmem:[%s226 + $0x38] sm:$0xff] %vm1333, %v1244
      %1342 = vst.msk [vmem:[%s226 + $0x40] sm:$0xff] %vm1333, %v1245
      %1343 = vst.msk [vmem:[%s226 + $0x48] sm:$0xff] %vm1333, %v1246
      %1344 = vst.msk [vmem:[%s226 + $0x50] sm:$0xff] %vm1333, %v1247
      %1345 = vst.msk [vmem:[%s226 + $0x58] sm:$0xff] %vm1333, %v1248
      %1346 = vst.msk [vmem:[%s226 + $0x60] sm:$0xff] %vm1333, %v1249
      %1347 = vst.msk [vmem:[%s226 + $0x68] sm:$0xff] %vm1333, %v1250
      %1348 = vst.msk [vmem:[%s226 + $0x70] sm:$0xff] %vm1333, %v1251
      %1349 = vst.msk [vmem:[%s226 + $0x78] sm:$0xff] %vm1333, %v1252
      %vm1350 = vcmask 31768
      %1351 = vst.msk [vmem:[%s226] sm:$0xff] %vm1350, %v1317
      %1352 = vst.msk [vmem:[%s226 + $0x8] sm:$0xff] %vm1350, %v1318
      %1353 = vst.msk [vmem:[%s226 + $0x10] sm:$0xff] %vm1350, %v1319
      %1354 = vst.msk [vmem:[%s226 + $0x18] sm:$0xff] %vm1350, %v1320
      %1355 = vst.msk [vmem:[%s226 + $0x20] sm:$0xff] %vm1350, %v1321
      %1356 = vst.msk [vmem:[%s226 + $0x28] sm:$0xff] %vm1350, %v1322
      %1357 = vst.msk [vmem:[%s226 + $0x30] sm:$0xff] %vm1350, %v1323
      %1358 = vst.msk [vmem:[%s226 + $0x38] sm:$0xff] %vm1350, %v1324
      %1359 = vst.msk [vmem:[%s226 + $0x40] sm:$0xff] %vm1350, %v1325
      %1360 = vst.msk [vmem:[%s226 + $0x48] sm:$0xff] %vm1350, %v1326
      %1361 = vst.msk [vmem:[%s226 + $0x50] sm:$0xff] %vm1350, %v1327
      %1362 = vst.msk [vmem:[%s226 + $0x58] sm:$0xff] %vm1350, %v1328
      %1363 = vst.msk [vmem:[%s226 + $0x60] sm:$0xff] %vm1350, %v1329
      %1364 = vst.msk [vmem:[%s226 + $0x68] sm:$0xff] %vm1350, %v1330
      %1365 = vst.msk [vmem:[%s226 + $0x70] sm:$0xff] %vm1350, %v1331
      %1366 = vst.msk [vmem:[%s226 + $0x78] sm:$0xff] %vm1350, %v1332
      %s1367 = smul.u32 16, %s16
      %p1368 = scmp.lt.s32.totalorder %s1367, 31
      %s1369 = scalar_select %p1368, %s1367, 31
      %s1370 = smul.addr %s1369, 8
      %s1371 = scalar_lea.vmem %s5, %s1370
      // Predicated region
      $region41: #{tpu_custom_call.1} parent=39 // pred_check
        %p1372 = pneg %p144
      $region42: #{tpu_custom_call.1} parent=39 // pred_check_branch
        %1374 = sbr.rel (%p1372) target = $region44
      $region43: #{tpu_custom_call.1} parent=39 // pred_region
        %s1375 = smul.u32 16, %s16
      $region44: #{tpu_custom_call.1} parent=39 // pred_fallthru
        _
    $region40: #{tpu_custom_call.1} parent=5 // pred_fallthru
      _
    %p1376 = scmp.le.s32.totalorder 2, %s11
    // Predicated region
    $region45: #{tpu_custom_call.1} parent=5 // pred_check
      %p1377 = pneg %p1376
    $region46: #{tpu_custom_call.1} parent=5 // pred_check_branch
      %1379 = sbr.rel (%p1377) target = $region48
    $region47: #{tpu_custom_call.1} parent=5 // pred_region
      %s1380 = ssub.s32 %s11, 2
      // Predicated region
      $region49: #{tpu_custom_call.1} parent=47 // pred_check
        %p1381 = pneg %p150
      $region50: #{tpu_custom_call.1} parent=47 // pred_check_branch
        %1383 = sbr.rel (%p1381) target = $region52
      $region51: #{tpu_custom_call.1} parent=47 // pred_region
        %s1384 = smul.u32 16, %s17
        %p1385 = scmp.lt.s32.totalorder %s1384, 31
        %s1386 = scalar_select %p1385, %s1384, 31
        %s1387 = smul.addr %s1386, 8
        %s1388 = scalar_lea.vmem %s5, %s1387
      $region52: #{tpu_custom_call.1} parent=47 // pred_fallthru
        _
    $region48: #{tpu_custom_call.1} parent=5 // pred_fallthru
      _
  $region6: #{tpu_custom_call.1} parent=0 // loop_footer
    %s15 = sadd.s32 1, %s11
  $region7: #{tpu_custom_call.1} parent=0 // loop_footer_branch
    %10 = sbr.rel target = $region3
  $region8: #{tpu_custom_call.1} parent=0 // loop_exit
    _

</llo_original>
